<compile_context>
chip_gen: v7x
topology: tpu7x:2x2x1
jax: 0.10.0
libtpu: 0.0.40
codegen_flags: <defaults>
</compile_context>

<pallas_src>
import jax
import jax.numpy as jnp
from jax.experimental import pallas as pl
from jax.experimental.pallas import tpu as pltpu

LANE = 128  # lane width: last block dim must be a multiple of this


def _round_up(n, m):
    return ((n + m - 1) // m) * m


def _sublane(dtype):
    # Min second-to-last tile dim: 8 for f32, 16 for bf16, 32 for 1-byte types.
    return max(8, 32 // jnp.dtype(dtype).itemsize)


def _vmem_budget_bytes():
    """Generation-aware VMEM budget (v7x: 64 MiB/TC, v5e/v6e: 128 MiB)."""
    try:
        cap = int(pltpu.get_tpu_info().vmem_capacity_bytes)
    except Exception:
        cap = 64 * 1024 * 1024  # conservative fallback (v7x per-TC size)
    vmem_limit = int(cap * 0.85)              # headroom for Mosaic internal scratch
    budget = vmem_limit - 4 * 1024 * 1024     # extra margin for semaphores / temps
    return budget, vmem_limit


def _ffn_kernel(x_ref, w1_ref, b1_ref, w2_ref, b2_ref, o_ref, acc_ref):
    """One (batch-tile, hidden-chunk) step of relu(x @ W1 + b1) @ W2 + b2."""
    k = pl.program_id(1)

    @pl.when(k == 0)
    def _():
        acc_ref[...] = jnp.zeros_like(acc_ref)

    # h_k = relu(x @ W1[:, k-chunk] + b1[k-chunk])  (bf16 MXU feed, f32 accumulate)
    x_bf16 = x_ref[...].astype(jnp.bfloat16)
    h = jnp.dot(x_bf16, w1_ref[...], preferred_element_type=jnp.float32)
    h = jnp.maximum(h + b1_ref[...], 0.0)

    # acc += h_k @ W2[k-chunk, :]
    acc_ref[...] += jnp.dot(h.astype(jnp.bfloat16), w2_ref[...],
                            preferred_element_type=jnp.float32)

    @pl.when(k == pl.num_programs(1) - 1)
    def _():
        o_ref[...] = (acc_ref[...] + b2_ref[...]).astype(o_ref.dtype)


def prepare_ffn_params(w1, b1, w2, b2):
    """Pad feature dims to lane multiples, cast weights to bf16, pick the
    hidden-dim chunking.  Do this ONCE and reuse across calls.

    w1: [in, H], b1: [H] or [1, H], w2: [H, out], b2: [out] or [1, out]
    (PyTorch nn.Linear stores weight as [out, in]; pass it transposed.)
    """
    b1 = jnp.reshape(b1, (1, -1)).astype(jnp.float32)
    b2 = jnp.reshape(b2, (1, -1)).astype(jnp.float32)
    in_size, hidden = w1.shape
    out_size = w2.shape[1]

    in_p = _round_up(in_size, LANE)
    h_p = _round_up(hidden, LANE)
    out_p = _round_up(out_size, LANE)

    budget, vmem_limit = _vmem_budget_bytes()

    # Resident weight bytes (bf16 weights, f32 biases) with `nbuf` pipeline buffers.
    def wbytes(tk, nbuf):
        return nbuf * (in_p * tk * 2 + tk * 4 + tk * out_p * 2) + 2 * out_p * 4

    # Hidden-dim chunk: keep the whole hidden dim resident (single-buffered) if
    # it fits half the budget, otherwise stream it in double-buffered chunks.
    if wbytes(h_p, 1) <= budget // 2:
        tk_h, w_nbuf = h_p, 1
    else:
        tk_h = _round_up(max(h_p // 2, LANE), LANE)
        while tk_h > LANE and wbytes(tk_h, 2) > budget // 2:
            tk_h = _round_up(max(tk_h // 2, LANE), LANE)
        w_nbuf = 2
    h_p = _round_up(h_p, tk_h)  # re-pad so tk_h divides the hidden dim evenly

    w1_p = jnp.pad(w1, ((0, in_p - in_size), (0, h_p - hidden))).astype(jnp.bfloat16)
    b1_p = jnp.pad(b1, ((0, 0), (0, h_p - hidden)))
    w2_p = jnp.pad(w2, ((0, h_p - hidden), (0, out_p - out_size))).astype(jnp.bfloat16)
    b2_p = jnp.pad(b2, ((0, 0), (0, out_p - out_size)))

    return dict(w1=w1_p, b1=b1_p, w2=w2_p, b2=b2_p,
                in_size=in_size, hidden=hidden, out_size=out_size,
                in_p=in_p, h_p=h_p, out_p=out_p,
                tk_h=tk_h, w_nbuf=w_nbuf,
                budget=budget, vmem_limit=vmem_limit)


def feed_forward_prepared(x, params):
    """x: [B, in_size] -> [B, out_size] using pre-padded/cast params."""
    B, in_size = x.shape
    assert in_size == params["in_size"], "input feature dim mismatch"
    in_p, h_p, out_p = params["in_p"], params["h_p"], params["out_p"]
    tk_h, w_nbuf = params["tk_h"], params["w_nbuf"]
    budget, vmem_limit = params["budget"], params["vmem_limit"]
    out_size = params["out_size"]

    x_isz = jnp.dtype(x.dtype).itemsize
    sub = _sublane(x.dtype)

    # Per-batch-row VMEM bytes: double-buffered x/out tiles, f32 accumulator,
    # plus in-kernel temporaries (bf16 x cast, f32/bf16 hidden chunk, f32 o temp).
    per_row = (2 * in_p * x_isz + in_p * 2
               + 2 * out_p * x_isz + out_p * 4 + out_p * 4
               + tk_h * 4 + tk_h * 2)
    wbytes = w_nbuf * (in_p * tk_h * 2 + tk_h * 4 + tk_h * out_p * 2) + 2 * out_p * 4
    avail = max(budget - wbytes, sub * per_row)
    tm = int(max(sub, min(1024, (avail // per_row // sub) * sub)))

    b_al = _round_up(B, sub)
    tm = min(tm, b_al)
    # Keep >=2 batch grid steps when the batch allows it (v7x second TC).
    if b_al >= 2 * sub and tm >= b_al:
        tm = _round_up((b_al + 1) // 2, sub)
    b_p = _round_up(B, tm)

    n_b = b_p // tm
    n_k = h_p // tk_h

    # Fast path: skip the pad when already aligned.
    if (b_p, in_p) != (B, in_size):
        x_p = jnp.pad(x, ((0, b_p - B), (0, in_p - in_size)))
    else:
        x_p = x

    w_inv = (n_k == 1)  # whole hidden dim resident -> weights are grid-invariant

    cost = pl.CostEstimate(
        flops=2 * b_p * (in_p * h_p + h_p * out_p),
        transcendentals=0,
        bytes_accessed=int(b_p * in_p * x_isz
                           + (n_b if n_k > 1 else 1) * 2 * (in_p * h_p + h_p * out_p)
                           + 4 * (h_p + out_p)
                           + b_p * out_p * x_isz),
    )

    def make_call(single_buffer_invariants):
        def spec(shape, index_map, invariant):
            if single_buffer_invariants and invariant:
                return pl.BlockSpec(shape, index_map, pipeline_mode=pl.Buffered(1))
            return pl.BlockSpec(shape, index_map)

        return pl.pallas_call(
            _ffn_kernel,
            out_shape=jax.ShapeDtypeStruct((b_p, out_p), x.dtype),
            grid_spec=pltpu.PrefetchScalarGridSpec(
                num_scalar_prefetch=0,
                grid=(n_b, n_k),
                in_specs=[
                    pl.BlockSpec((tm, in_p), lambda i, k: (i, 0)),    # x row-tile
                    spec((in_p, tk_h), lambda i, k: (0, k), w_inv),   # W1 chunk
                    spec((1, tk_h), lambda i, k: (0, k), w_inv),      # b1 chunk
                    spec((tk_h, out_p), lambda i, k: (k, 0), w_inv),  # W2 chunk
                    spec((1, out_p), lambda i, k: (0, 0), True),      # b2 (invariant)
                ],
                out_specs=pl.BlockSpec((tm, out_p), lambda i, k: (i, 0)),
                scratch_shapes=[pltpu.VMEM((tm, out_p), jnp.float32)],
            ),
            compiler_params=pltpu.CompilerParams(
                dimension_semantics=("parallel", "arbitrary"),
                vmem_limit_bytes=int(vmem_limit),
            ),
            cost_estimate=cost,
        )

    args = (x_p, params["w1"], params["b1"], params["w2"], params["b2"])
    try:
        out_padded = make_call(True)(*args)
    except Exception:
        # pipeline_mode hint unsupported on this jax version -> default buffering.
        out_padded = make_call(False)(*args)

    # Fast path: skip the slice when already aligned.
    if (b_p, out_p) != (B, out_size):
        out_padded = out_padded[:B, :out_size]
    return out_padded


def feed_forward(x, w1, b1, w2, b2):
    """Convenience wrapper: Linear -> ReLU -> Linear in one fused kernel."""
    return feed_forward_prepared(x, prepare_ffn_params(w1, b1, w2, b2))


if __name__ == "__main__":
    # Small shapes consistent with Feed_Forward(in_size, hidden_size, out_size).
    batch, in_size, hidden_size, out_size = 8, 16, 32, 16

    key = jax.random.PRNGKey(0)
    kx, k1, kb1, k2, kb2 = jax.random.split(key, 5)

    x = jax.random.normal(kx, (batch, in_size), dtype=jnp.float32)

    # PyTorch Linear stores weight as [out_features, in_features]; we keep the
    # transposed [in, out] form so the kernel does plain x @ W matmuls.
    w1 = jax.random.normal(k1, (in_size, hidden_size), dtype=jnp.float32) * 0.1
    b1 = jax.random.normal(kb1, (1, hidden_size), dtype=jnp.float32) * 0.1
    w2 = jax.random.normal(k2, (hidden_size, out_size), dtype=jnp.float32) * 0.1
    b2 = jax.random.normal(kb2, (1, out_size), dtype=jnp.float32) * 0.1

    params = prepare_ffn_params(w1, b1, w2, b2)   # pad + bf16-cast once
    out = feed_forward_prepared(x, params)
    out = jax.block_until_ready(out)

    # Reference mirroring the kernel numerics (bf16 MXU feed, f32 accumulate).
    h_ref = jnp.maximum(
        jnp.dot(x.astype(jnp.bfloat16), w1.astype(jnp.bfloat16),
                preferred_element_type=jnp.float32) + b1, 0.0)
    ref = (jnp.dot(h_ref.astype(jnp.bfloat16), w2.astype(jnp.bfloat16),
                   preferred_element_type=jnp.float32) + b2).astype(x.dtype)

    # Pure f32 reference (the original module math) for a looser sanity check.
    ref_f32 = jnp.maximum(x @ w1 + b1, 0.0) @ w2 + b2

    assert out.shape == ref.shape, f"shape mismatch {out.shape} vs {ref.shape}"
    assert jnp.allclose(out, ref, atol=5e-3, rtol=5e-3), "mismatch vs bf16 reference"
    assert jnp.allclose(out, ref_f32, atol=5e-2, rtol=5e-2), "mismatch vs f32 reference"

    print("KERNEL_OK")
</pallas_src>

<mosaic_0001>
module attributes {stable_mosaic.version = 11 : i64} {
  func.func @_ffn_kernel(%arg0: i32, %arg1: i32, %arg2: memref<8x128xf32, #tpu.memory_space<vmem>>, %arg3: memref<128x128xbf16, #tpu.memory_space<vmem>>, %arg4: memref<1x128xf32, #tpu.memory_space<vmem>>, %arg5: memref<128x128xbf16, #tpu.memory_space<vmem>>, %arg6: memref<1x128xf32, #tpu.memory_space<vmem>>, %arg7: memref<8x128xf32, #tpu.memory_space<vmem>>, %arg8: memref<8x128xf32, #tpu.memory_space<vmem>>) attributes {dimension_semantics = [#tpu.dimension_semantics<parallel>, #tpu.dimension_semantics<arbitrary>], iteration_bounds = array<i64: 1, 1>, scalar_prefetch = 0 : i64, scratch_operands = 1 : i64, tpu.core_type = #tpu.core_type<tc>, window_params = [{transform_indices = @transform_0, window_bounds = array<i64: 8, 128>}, {pipeline_mode = #tpu.pipeline_mode<synchronous>, transform_indices = @transform_1, window_bounds = array<i64: 128, 128>}, {pipeline_mode = #tpu.pipeline_mode<synchronous>, transform_indices = @transform_2, window_bounds = array<i64: 1, 128>}, {pipeline_mode = #tpu.pipeline_mode<synchronous>, transform_indices = @transform_3, window_bounds = array<i64: 128, 128>}, {pipeline_mode = #tpu.pipeline_mode<synchronous>, transform_indices = @transform_4, window_bounds = array<i64: 1, 128>}, {transform_indices = @transform_5, window_bounds = array<i64: 8, 128>}]} {
    %c0_i32 = arith.constant 0 : i32
    %0 = arith.cmpi eq, %arg1, %c0_i32 : i32
    %1 = arith.extui %0 : i1 to i32
    %c0_i32_0 = arith.constant 0 : i32
    %2 = arith.cmpi ne, %1, %c0_i32_0 : i32
    scf.if %2 {
      %cst_16 = arith.constant 0.000000e+00 : f32
      %21 = vector.broadcast %cst_16 : f32 to vector<8x128xf32>
      %c0_17 = arith.constant 0 : index
      %c0_18 = arith.constant 0 : index
      %22 = vector.load %arg8[%c0_17, %c0_18] : memref<8x128xf32, #tpu.memory_space<vmem>>, vector<8x128xf32>
      tpu.vector_store %arg8[%c0_17, %c0_18], %21 {strides = array<i32>} : memref<8x128xf32, #tpu.memory_space<vmem>>, vector<8x128xf32>,
    } else {
    }
    %c0 = arith.constant 0 : index
    %c0_1 = arith.constant 0 : index
    %3 = vector.load %arg2[%c0, %c0_1] : memref<8x128xf32, #tpu.memory_space<vmem>>, vector<8x128xf32>
    %4 = arith.truncf %3 : vector<8x128xf32> to vector<8x128xbf16>
    %c0_2 = arith.constant 0 : index
    %c0_3 = arith.constant 0 : index
    %5 = vector.load %arg3[%c0_2, %c0_3] : memref<128x128xbf16, #tpu.memory_space<vmem>>, vector<128x128xbf16>
    %cst = arith.constant dense<0.000000e+00> : vector<8x128xf32>
    %6 = tpu.matmul %4, %5, %cst {dimension_numbers = #tpu.dot_dimension_numbers<[1], [0], [0], [1], [0, 0, 1, 1], [], []>} : vector<8x128xbf16>, vector<128x128xbf16>, vector<8x128xf32> -> vector<8x128xf32>
    %c0_4 = arith.constant 0 : index
    %c0_5 = arith.constant 0 : index
    %7 = vector.load %arg4[%c0_4, %c0_5] : memref<1x128xf32, #tpu.memory_space<vmem>>, vector<1x128xf32>
    %8 = vector.broadcast %7 : vector<1x128xf32> to vector<8x128xf32>
    %9 = arith.addf %6, %8 : vector<8x128xf32>
    %cst_6 = arith.constant 0.000000e+00 : f32
    %10 = vector.broadcast %cst_6 : f32 to vector<8x128xf32>
    %11 = arith.maximumf %9, %10 : vector<8x128xf32>
    %c0_7 = arith.constant 0 : index
    %c0_8 = arith.constant 0 : index
    %12 = vector.load %arg8[%c0_7, %c0_8] : memref<8x128xf32, #tpu.memory_space<vmem>>, vector<8x128xf32>
    %13 = arith.truncf %11 : vector<8x128xf32> to vector<8x128xbf16>
    %c0_9 = arith.constant 0 : index
    %c0_10 = arith.constant 0 : index
    %14 = vector.load %arg5[%c0_9, %c0_10] : memref<128x128xbf16, #tpu.memory_space<vmem>>, vector<128x128xbf16>
    %cst_11 = arith.constant dense<0.000000e+00> : vector<8x128xf32>
    %15 = tpu.matmul %13, %14, %cst_11 {dimension_numbers = #tpu.dot_dimension_numbers<[1], [0], [0], [1], [0, 0, 1, 1], [], []>} : vector<8x128xbf16>, vector<128x128xbf16>, vector<8x128xf32> -> vector<8x128xf32>
    %16 = arith.addf %12, %15 : vector<8x128xf32>
    %c0_12 = arith.constant 0 : index
    %c0_13 = arith.constant 0 : index
    %17 = vector.load %arg8[%c0_12, %c0_13] : memref<8x128xf32, #tpu.memory_space<vmem>>, vector<8x128xf32>
    tpu.vector_store %arg8[%c0_12, %c0_13], %16 {strides = array<i32>} : memref<8x128xf32, #tpu.memory_space<vmem>>, vector<8x128xf32>,
    %c0_i32_14 = arith.constant 0 : i32
    %18 = arith.cmpi eq, %arg1, %c0_i32_14 : i32
    %19 = arith.extui %18 : i1 to i32
    %c0_i32_15 = arith.constant 0 : i32
    %20 = arith.cmpi ne, %19, %c0_i32_15 : i32
    scf.if %20 {
      %c0_16 = arith.constant 0 : index
      %c0_17 = arith.constant 0 : index
      %21 = vector.load %arg8[%c0_16, %c0_17] : memref<8x128xf32, #tpu.memory_space<vmem>>, vector<8x128xf32>
      %c0_18 = arith.constant 0 : index
      %c0_19 = arith.constant 0 : index
      %22 = vector.load %arg6[%c0_18, %c0_19] : memref<1x128xf32, #tpu.memory_space<vmem>>, vector<1x128xf32>
      %23 = vector.broadcast %22 : vector<1x128xf32> to vector<8x128xf32>
      %24 = arith.addf %21, %23 : vector<8x128xf32>
      %c0_20 = arith.constant 0 : index
      %c0_21 = arith.constant 0 : index
      %25 = vector.load %arg7[%c0_20, %c0_21] : memref<8x128xf32, #tpu.memory_space<vmem>>, vector<8x128xf32>
      tpu.vector_store %arg7[%c0_20, %c0_21], %24 {strides = array<i32>} : memref<8x128xf32, #tpu.memory_space<vmem>>, vector<8x128xf32>,
    } else {
    }
    return
  }
  func.func @transform_0(%arg0: i32, %arg1: i32) -> (i32, i32) {
    %c0_i32 = arith.constant 0 : i32
    %c0_i32_0 = arith.constant 0 : i32
    return %arg0, %c0_i32 : i32, i32
  }
  func.func @transform_1(%arg0: i32, %arg1: i32) -> (i32, i32) {
    %c0_i32 = arith.constant 0 : i32
    %c0_i32_0 = arith.constant 0 : i32
    return %c0_i32, %arg1 : i32, i32
  }
  func.func @transform_2(%arg0: i32, %arg1: i32) -> (i32, i32) {
    %c0_i32 = arith.constant 0 : i32
    %c0_i32_0 = arith.constant 0 : i32
    return %c0_i32, %arg1 : i32, i32
  }
  func.func @transform_3(%arg0: i32, %arg1: i32) -> (i32, i32) {
    %c0_i32 = arith.constant 0 : i32
    %c0_i32_0 = arith.constant 0 : i32
    return %arg1, %c0_i32 : i32, i32
  }
  func.func @transform_4(%arg0: i32, %arg1: i32) -> (i32, i32) {
    %c0_i32 = arith.constant 0 : i32
    %c0_i32_0 = arith.constant 0 : i32
    %c0_i32_1 = arith.constant 0 : i32
    return %c0_i32, %c0_i32_0 : i32, i32
  }
  func.func @transform_5(%arg0: i32, %arg1: i32) -> (i32, i32) {
    %c0_i32 = arith.constant 0 : i32
    %c0_i32_0 = arith.constant 0 : i32
    return %arg0, %c0_i32 : i32, i32
  }
}

module attributes {stable_mosaic.version = 11 : i64} {
  func.func @_ffn_kernel(%arg0: i32, %arg1: i32, %arg2: memref<8x128xf32, #tpu.memory_space<vmem>>, %arg3: memref<128x128xbf16, #tpu.memory_space<vmem>>, %arg4: memref<1x128xf32, #tpu.memory_space<vmem>>, %arg5: memref<128x128xbf16, #tpu.memory_space<vmem>>, %arg6: memref<1x128xf32, #tpu.memory_space<vmem>>, %arg7: memref<8x128xf32, #tpu.memory_space<vmem>>, %arg8: memref<8x128xf32, #tpu.memory_space<vmem>>) attributes {dimension_semantics = [#tpu.dimension_semantics<parallel>, #tpu.dimension_semantics<arbitrary>], iteration_bounds = array<i64: 1, 1>, scalar_prefetch = 0 : i64, scratch_operands = 1 : i64, tpu.core_type = #tpu.core_type<tc>, window_params = [{transform_indices = @transform_0, window_bounds = array<i64: 8, 128>}, {transform_indices = @transform_1, window_bounds = array<i64: 128, 128>}, {transform_indices = @transform_2, window_bounds = array<i64: 1, 128>}, {transform_indices = @transform_3, window_bounds = array<i64: 128, 128>}, {pipeline_mode = #tpu.pipeline_mode<synchronous>, transform_indices = @transform_4, window_bounds = array<i64: 1, 128>}, {transform_indices = @transform_5, window_bounds = array<i64: 8, 128>}]} {
    %c0_i32 = arith.constant 0 : i32
    %0 = arith.cmpi eq, %arg1, %c0_i32 : i32
    %1 = arith.extui %0 : i1 to i32
    %c0_i32_0 = arith.constant 0 : i32
    %2 = arith.cmpi ne, %1, %c0_i32_0 : i32
    scf.if %2 {
      %cst_16 = arith.constant 0.000000e+00 : f32
      %21 = vector.broadcast %cst_16 : f32 to vector<8x128xf32>
      %c0_17 = arith.constant 0 : index
      %c0_18 = arith.constant 0 : index
      %22 = vector.load %arg8[%c0_17, %c0_18] : memref<8x128xf32, #tpu.memory_space<vmem>>, vector<8x128xf32>
      tpu.vector_store %arg8[%c0_17, %c0_18], %21 {strides = array<i32>} : memref<8x128xf32, #tpu.memory_space<vmem>>, vector<8x128xf32>,
    } else {
    }
    %c0 = arith.constant 0 : index
    %c0_1 = arith.constant 0 : index
    %3 = vector.load %arg2[%c0, %c0_1] : memref<8x128xf32, #tpu.memory_space<vmem>>, vector<8x128xf32>
    %4 = arith.truncf %3 : vector<8x128xf32> to vector<8x128xbf16>
    %c0_2 = arith.constant 0 : index
    %c0_3 = arith.constant 0 : index
    %5 = vector.load %arg3[%c0_2, %c0_3] : memref<128x128xbf16, #tpu.memory_space<vmem>>, vector<128x128xbf16>
    %cst = arith.constant dense<0.000000e+00> : vector<8x128xf32>
    %6 = tpu.matmul %4, %5, %cst {dimension_numbers = #tpu.dot_dimension_numbers<[1], [0], [0], [1], [0, 0, 1, 1], [], []>} : vector<8x128xbf16>, vector<128x128xbf16>, vector<8x128xf32> -> vector<8x128xf32>
    %c0_4 = arith.constant 0 : index
    %c0_5 = arith.constant 0 : index
    %7 = vector.load %arg4[%c0_4, %c0_5] : memref<1x128xf32, #tpu.memory_space<vmem>>, vector<1x128xf32>
    %8 = vector.broadcast %7 : vector<1x128xf32> to vector<8x128xf32>
    %9 = arith.addf %6, %8 : vector<8x128xf32>
    %cst_6 = arith.constant 0.000000e+00 : f32
    %10 = vector.broadcast %cst_6 : f32 to vector<8x128xf32>
    %11 = arith.maximumf %9, %10 : vector<8x128xf32>
    %c0_7 = arith.constant 0 : index
    %c0_8 = arith.constant 0 : index
    %12 = vector.load %arg8[%c0_7, %c0_8] : memref<8x128xf32, #tpu.memory_space<vmem>>, vector<8x128xf32>
    %13 = arith.truncf %11 : vector<8x128xf32> to vector<8x128xbf16>
    %c0_9 = arith.constant 0 : index
    %c0_10 = arith.constant 0 : index
    %14 = vector.load %arg5[%c0_9, %c0_10] : memref<128x128xbf16, #tpu.memory_space<vmem>>, vector<128x128xbf16>
    %cst_11 = arith.constant dense<0.000000e+00> : vector<8x128xf32>
    %15 = tpu.matmul %13, %14, %cst_11 {dimension_numbers = #tpu.dot_dimension_numbers<[1], [0], [0], [1], [0, 0, 1, 1], [], []>} : vector<8x128xbf16>, vector<128x128xbf16>, vector<8x128xf32> -> vector<8x128xf32>
    %16 = arith.addf %12, %15 : vector<8x128xf32>
    %c0_12 = arith.constant 0 : index
    %c0_13 = arith.constant 0 : index
    %17 = vector.load %arg8[%c0_12, %c0_13] : memref<8x128xf32, #tpu.memory_space<vmem>>, vector<8x128xf32>
    tpu.vector_store %arg8[%c0_12, %c0_13], %16 {strides = array<i32>} : memref<8x128xf32, #tpu.memory_space<vmem>>, vector<8x128xf32>,
    %c0_i32_14 = arith.constant 0 : i32
    %18 = arith.cmpi eq, %arg1, %c0_i32_14 : i32
    %19 = arith.extui %18 : i1 to i32
    %c0_i32_15 = arith.constant 0 : i32
    %20 = arith.cmpi ne, %19, %c0_i32_15 : i32
    scf.if %20 {
      %c0_16 = arith.constant 0 : index
      %c0_17 = arith.constant 0 : index
      %21 = vector.load %arg8[%c0_16, %c0_17] : memref<8x128xf32, #tpu.memory_space<vmem>>, vector<8x128xf32>
      %c0_18 = arith.constant 0 : index
      %c0_19 = arith.constant 0 : index
      %22 = vector.load %arg6[%c0_18, %c0_19] : memref<1x128xf32, #tpu.memory_space<vmem>>, vector<1x128xf32>
      %23 = vector.broadcast %22 : vector<1x128xf32> to vector<8x128xf32>
      %24 = arith.addf %21, %23 : vector<8x128xf32>
      %c0_20 = arith.constant 0 : index
      %c0_21 = arith.constant 0 : index
      %25 = vector.load %arg7[%c0_20, %c0_21] : memref<8x128xf32, #tpu.memory_space<vmem>>, vector<8x128xf32>
      tpu.vector_store %arg7[%c0_20, %c0_21], %24 {strides = array<i32>} : memref<8x128xf32, #tpu.memory_space<vmem>>, vector<8x128xf32>,
    } else {
    }
    return
  }
  func.func @transform_0(%arg0: i32, %arg1: i32) -> (i32, i32) {
    %c0_i32 = arith.constant 0 : i32
    %c0_i32_0 = arith.constant 0 : i32
    return %arg0, %c0_i32 : i32, i32
  }
  func.func @transform_1(%arg0: i32, %arg1: i32) -> (i32, i32) {
    %c0_i32 = arith.constant 0 : i32
    %c0_i32_0 = arith.constant 0 : i32
    return %c0_i32, %arg1 : i32, i32
  }
  func.func @transform_2(%arg0: i32, %arg1: i32) -> (i32, i32) {
    %c0_i32 = arith.constant 0 : i32
    %c0_i32_0 = arith.constant 0 : i32
    return %c0_i32, %arg1 : i32, i32
  }
  func.func @transform_3(%arg0: i32, %arg1: i32) -> (i32, i32) {
    %c0_i32 = arith.constant 0 : i32
    %c0_i32_0 = arith.constant 0 : i32
    return %arg1, %c0_i32 : i32, i32
  }
  func.func @transform_4(%arg0: i32, %arg1: i32) -> (i32, i32) {
    %c0_i32 = arith.constant 0 : i32
    %c0_i32_0 = arith.constant 0 : i32
    %c0_i32_1 = arith.constant 0 : i32
    return %c0_i32, %c0_i32_0 : i32, i32
  }
  func.func @transform_5(%arg0: i32, %arg1: i32) -> (i32, i32) {
    %c0_i32 = arith.constant 0 : i32
    %c0_i32_0 = arith.constant 0 : i32
    return %arg0, %c0_i32 : i32, i32
  }
}

</mosaic_0001>

<llo_original>
// kernel: tpu_custom_call.1
$region0: #{tpu_custom_call.1}
  #allocation0 [shape = 'u32[]', space=smem, size = 0x4, offset = 0x4, fixed_abs, tag = 'smem constant byte address 0x4 - core index']
  #allocation1 [shape = 'u32[144,128]{1,0:T(1,128)}', space=vmem, size = 0x12000, scoped, tag = 'internal scratch']
  #allocation2 [shape = 'f32[8,128]{1,0:T(8,128)}', space=vmem, size = 0x1000, scoped, tag = 'scratch operand']
  %s0 = inlined_call_operand.hbm [shape: f32[8,128], index: 0, kind: input, shape index: {}]
  %s1 = inlined_call_operand.hbm [shape: bf16[128,128], index: 1, kind: input, shape index: {}]
  %s2 = inlined_call_operand.vmem [shape: f32[1,128], index: 2, kind: input, shape index: {}]
  %s3 = inlined_call_operand.hbm [shape: bf16[128,128], index: 3, kind: input, shape index: {}]
  %s4 = inlined_call_operand.vmem [shape: f32[1,128], index: 4, kind: input, shape index: {}]
  %s5 = inlined_call_operand.hbm [shape: f32[8,128], index: 5, kind: output, shape index: {}]
  %s6 = sld [smem:[#allocation0]]
  $region50: #{tpu_custom_call.1} parent=0
    _
  %s8 = ssub.s32 1, %s6
  %s9 = scalar_select 0, %s8, %s6
  $region1: #{tpu_custom_call.1} parent=0
    #allocation3 [shape = 'u8[4096]{0}', space=vmem, size = 0x1000, scoped, tag = 'input window, operand 0, single buffered']
    #allocation4 [shape = 's32[1]{0}', space=sflag, size = 0x4, scoped, tag = 'scoped memory for tpu_custom_call.1']
    #allocation5 [shape = 's32[1]{0}', space=sflag, size = 0x4, scoped, tag = 'scoped memory for tpu_custom_call.1']
    #allocation6 [shape = 'u8[32768]{0}', space=vmem, size = 0x8000, scoped, tag = 'input window, operand 1, single buffered']
    #allocation7 [shape = 's32[1]{0}', space=sflag, size = 0x4, scoped, tag = 'scoped memory for tpu_custom_call.1']
    #allocation8 [shape = 'u8[32768]{0}', space=vmem, size = 0x8000, scoped, tag = 'input window, operand 3, single buffered']
    #allocation9 [shape = 'u8[4096]{0}', space=vmem, size = 0x1000, scoped, tag = 'output window, operand 0, single buffered']
    %10 = vsyncpa [#allocation4], 0
    %11 = vsyncpa [#allocation7], 0
    %12 = vsyncpa [#allocation5], 0
    // Predicated region
    $region2: #{tpu_custom_call.1} parent=1 // pred_check
      _
    $region3: #{tpu_custom_call.1} parent=1 // pred_check_branch
      %14 = sbr.rel (0) target = $region5
    $region4: #{tpu_custom_call.1} parent=1 // pred_region
      %s16 = ssub.s32 128, 128
      %17 = vsyncadd [#allocation4], %s16
      %s19 = sshll.u32 [#allocation3], 4
      %s20 = int_to_ptr.vmem [resolvable:$true] %s19
      %22 = dma.hbm_to_vmem [thread:$0]  %s0, 128, %s20, [#allocation4]
    $region5: #{tpu_custom_call.1} parent=1 // pred_fallthru
      _
    // Predicated region
    $region6: #{tpu_custom_call.1} parent=1 // pred_check
      _
    $region7: #{tpu_custom_call.1} parent=1 // pred_check_branch
      %24 = sbr.rel (0) target = $region9
    $region8: #{tpu_custom_call.1} parent=1 // pred_region
      %s26 = ssub.s32 1024, 1024
      %27 = vsyncadd [#allocation7], %s26
      %s28 = sshll.u32 [#allocation6], 4
      %s29 = int_to_ptr.vmem [resolvable:$true] %s28
      %34 = dma.hbm_to_vmem [thread:$0]  %s1, 1024, %s29, [#allocation7], 64, 64, 4
    $region9: #{tpu_custom_call.1} parent=1 // pred_fallthru
      _
    // Predicated region
    $region10: #{tpu_custom_call.1} parent=1 // pred_check
      _
    $region11: #{tpu_custom_call.1} parent=1 // pred_check_branch
      %36 = sbr.rel (0) target = $region13
    $region12: #{tpu_custom_call.1} parent=1 // pred_region
      _
    $region13: #{tpu_custom_call.1} parent=1 // pred_fallthru
      _
    // Predicated region
    $region14: #{tpu_custom_call.1} parent=1 // pred_check
      _
    $region15: #{tpu_custom_call.1} parent=1 // pred_check_branch
      %38 = sbr.rel (0) target = $region17
    $region16: #{tpu_custom_call.1} parent=1 // pred_region
      %s40 = ssub.s32 1024, 1024
      %41 = vsyncadd [#allocation7], %s40
      %s42 = sshll.u32 [#allocation8], 4
      %s43 = int_to_ptr.vmem [resolvable:$true] %s42
      %48 = dma.hbm_to_vmem [thread:$0]  %s3, 1024, %s43, [#allocation7], 64, 64, 4
    $region17: #{tpu_custom_call.1} parent=1 // pred_fallthru
      _
    // Predicated region
    $region18: #{tpu_custom_call.1} parent=1 // pred_check
      _
    $region19: #{tpu_custom_call.1} parent=1 // pred_check_branch
      %50 = sbr.rel (0) target = $region21
    $region20: #{tpu_custom_call.1} parent=1 // pred_region
      _
    $region21: #{tpu_custom_call.1} parent=1 // pred_fallthru
      _
    // Predicated region
    $region22: #{tpu_custom_call.1} parent=1 // pred_check
      _
    $region23: #{tpu_custom_call.1} parent=1 // pred_check_branch
      %52 = sbr.rel (0) target = $region25
    $region24: #{tpu_custom_call.1} parent=1 // pred_region
      %53 = dma.done [#allocation4], 128
    $region25: #{tpu_custom_call.1} parent=1 // pred_fallthru
      _
    // Predicated region
    $region26: #{tpu_custom_call.1} parent=1 // pred_check
      _
    $region27: #{tpu_custom_call.1} parent=1 // pred_check_branch
      %55 = sbr.rel (0) target = $region29
    $region28: #{tpu_custom_call.1} parent=1 // pred_region
      %56 = dma.done [#allocation7], 1024
    $region29: #{tpu_custom_call.1} parent=1 // pred_fallthru
      _
    // Predicated region
    $region30: #{tpu_custom_call.1} parent=1 // pred_check
      _
    $region31: #{tpu_custom_call.1} parent=1 // pred_check_branch
      %58 = sbr.rel (0) target = $region33
    $region32: #{tpu_custom_call.1} parent=1 // pred_region
      %59 = dma.done [#allocation7], 1024
    $region33: #{tpu_custom_call.1} parent=1 // pred_fallthru
      _
    %p61 = scmp.eq.s32.totalorder 0, 0
    // Predicated region
    $region34: #{tpu_custom_call.1} parent=1 // pred_check
      %p62 = pneg %p61
    $region35: #{tpu_custom_call.1} parent=1 // pred_check_branch
      %64 = sbr.rel (%p62) target = $region37
    $region36: #{tpu_custom_call.1} parent=1 // pred_region
      %65 = vst [vmem:[#allocation2] sm:$0xff] 0.0
    $region37: #{tpu_custom_call.1} parent=1 // pred_fallthru
      _
    %v66 = vld [vmem:[#allocation3] sm:$0xff]
    %v67 = vpack.c.bf16 %v66, %v66
    %v68 = vld [vmem:[#allocation6] sm:$0xf]
    %v69 = vld [vmem:[#allocation6 + $0x4] sm:$0xf]
    %v70 = vld [vmem:[#allocation6 + $0x8] sm:$0xf]
    %v71 = vld [vmem:[#allocation6 + $0xc] sm:$0xf]
    %v72 = vld [vmem:[#allocation6 + $0x10] sm:$0xf]
    %v73 = vld [vmem:[#allocation6 + $0x14] sm:$0xf]
    %v74 = vld [vmem:[#allocation6 + $0x18] sm:$0xf]
    %v75 = vld [vmem:[#allocation6 + $0x1c] sm:$0xf]
    %v76 = vld [vmem:[#allocation6 + $0x20] sm:$0xf]
    %v77 = vld [vmem:[#allocation6 + $0x24] sm:$0xf]
    %v78 = vld [vmem:[#allocation6 + $0x28] sm:$0xf]
    %v79 = vld [vmem:[#allocation6 + $0x2c] sm:$0xf]
    %v80 = vld [vmem:[#allocation6 + $0x30] sm:$0xf]
    %v81 = vld [vmem:[#allocation6 + $0x34] sm:$0xf]
    %v82 = vld [vmem:[#allocation6 + $0x38] sm:$0xf]
    %v83 = vld [vmem:[#allocation6 + $0x3c] sm:$0xf]
    %v84 = vld [vmem:[%s2] sm:$0x1]
    %v86 = vlaneseq
    %v87 = vshrl.u32 %v86, 7
    %v88 = vsub.s32 0, %v87
    %v89 = vrot.slane %v84, %v88
    %v107 = vunpack.c.l.b16 %v68
    %v108 = vunpack.c.l.b16 %v69
    %v109 = vunpack.c.l.b16 %v70
    %v110 = vunpack.c.l.b16 %v71
    %v111 = vunpack.c.l.b16 %v72
    %v112 = vunpack.c.l.b16 %v73
    %v113 = vunpack.c.l.b16 %v74
    %v114 = vunpack.c.l.b16 %v75
    %v115 = vunpack.c.l.b16 %v76
    %v116 = vunpack.c.l.b16 %v77
    %v117 = vunpack.c.l.b16 %v78
    %v118 = vunpack.c.l.b16 %v79
    %v119 = vunpack.c.l.b16 %v80
    %v120 = vunpack.c.l.b16 %v81
    %v121 = vunpack.c.l.b16 %v82
    %v122 = vunpack.c.l.b16 %v83
    %v123 = vpack.c.b16 %v108, %v107
    %v124 = vpack.c.b16 %v110, %v109
    %v125 = vpack.c.b16 %v112, %v111
    %v126 = vpack.c.b16 %v114, %v113
    %v127 = vpack.c.b16 %v116, %v115
    %v128 = vpack.c.b16 %v118, %v117
    %v129 = vpack.c.b16 %v120, %v119
    %v130 = vpack.c.b16 %v122, %v121
    %139 = vmatprep.subr.bf16.mxu0 0
    %140 = vmatpush1.bf16.msra.mxu0 %v123
    %141 = vmatprep.subr.bf16.mxu0 0
    %142 = vmatpush1.bf16.msra.mxu0 %v124
    %143 = vmatprep.subr.bf16.mxu0 0
    %144 = vmatpush1.bf16.msra.mxu0 %v125
    %145 = vmatprep.subr.bf16.mxu0 0
    %146 = vmatpush1.bf16.msra.mxu0 %v126
    %147 = vmatprep.subr.bf16.mxu0 0
    %148 = vmatpush1.bf16.msra.mxu0 %v127
    %149 = vmatprep.subr.bf16.mxu0 0
    %150 = vmatpush1.bf16.msra.mxu0 %v128
    %151 = vmatprep.subr.bf16.mxu0 0
    %152 = vmatpush1.bf16.msra.mxu0 %v129
    %153 = vmatprep.subr.bf16.mxu0 0
    %154 = vmatpush1.bf16.msra.mxu0 %v130
    %155 = vmatprep.subr.bf16.mxu0 0
    %156 = vmatpush1.bf16.msra.mxu0 0
    %157 = vmatprep.subr.bf16.mxu0 0
    %158 = vmatpush1.bf16.msra.mxu0 0
    %159 = vmatprep.subr.bf16.mxu0 0
    %160 = vmatpush1.bf16.msra.mxu0 0
    %161 = vmatprep.subr.bf16.mxu0 0
    %162 = vmatpush1.bf16.msra.mxu0 0
    %163 = vmatprep.subr.bf16.mxu0 0
    %164 = vmatpush1.bf16.msra.mxu0 0
    %165 = vmatprep.subr.bf16.mxu0 0
    %166 = vmatpush1.bf16.msra.mxu0 0
    %167 = vmatprep.subr.bf16.mxu0 0
    %168 = vmatpush1.bf16.msra.mxu0 0
    %169 = vmatprep.subr.bf16.mxu0 0
    %170 = vmatpush1.bf16.msra.mxu0 0
    %171 = vmatprep.mubr.bf16.mxu0 0
    %172 = vmatmul.mubr.bf16.gmra.mrb[0].mxu0 %v67
    %v173 = vpop.f32.mrb[0].mxu0
    %v174 = vadd.f32 %v89, %v173
    %v175 = vpop.f32.mrb[0].mxu0
    %v176 = vpop.f32.mrb[0].mxu0
    %v177 = vpop.f32.mrb[0].mxu0
    %178 = vdwg.mxu0
    %v179 = vmax.f32 %v174, 0.0
    %v180 = vld [vmem:[#allocation2] sm:$0xff]
    %v181 = vpack.c.bf16 %v179, %v179
    %v182 = vld [vmem:[#allocation8] sm:$0xf]
    %v183 = vld [vmem:[#allocation8 + $0x4] sm:$0xf]
    %v184 = vld [vmem:[#allocation8 + $0x8] sm:$0xf]
    %v185 = vld [vmem:[#allocation8 + $0xc] sm:$0xf]
    %v186 = vld [vmem:[#allocation8 + $0x10] sm:$0xf]
    %v187 = vld [vmem:[#allocation8 + $0x14] sm:$0xf]
    %v188 = vld [vmem:[#allocation8 + $0x18] sm:$0xf]
    %v189 = vld [vmem:[#allocation8 + $0x1c] sm:$0xf]
    %v190 = vld [vmem:[#allocation8 + $0x20] sm:$0xf]
    %v191 = vld [vmem:[#allocation8 + $0x24] sm:$0xf]
    %v192 = vld [vmem:[#allocation8 + $0x28] sm:$0xf]
    %v193 = vld [vmem:[#allocation8 + $0x2c] sm:$0xf]
    %v194 = vld [vmem:[#allocation8 + $0x30] sm:$0xf]
    %v195 = vld [vmem:[#allocation8 + $0x34] sm:$0xf]
    %v196 = vld [vmem:[#allocation8 + $0x38] sm:$0xf]
    %v197 = vld [vmem:[#allocation8 + $0x3c] sm:$0xf]
    %v214 = vunpack.c.l.b16 %v182
    %v215 = vunpack.c.l.b16 %v183
    %v216 = vunpack.c.l.b16 %v184
    %v217 = vunpack.c.l.b16 %v185
    %v218 = vunpack.c.l.b16 %v186
    %v219 = vunpack.c.l.b16 %v187
    %v220 = vunpack.c.l.b16 %v188
    %v221 = vunpack.c.l.b16 %v189
    %v222 = vunpack.c.l.b16 %v190
    %v223 = vunpack.c.l.b16 %v191
    %v224 = vunpack.c.l.b16 %v192
    %v225 = vunpack.c.l.b16 %v193
    %v226 = vunpack.c.l.b16 %v194
    %v227 = vunpack.c.l.b16 %v195
    %v228 = vunpack.c.l.b16 %v196
    %v229 = vunpack.c.l.b16 %v197
    %v230 = vpack.c.b16 %v215, %v214
    %v231 = vpack.c.b16 %v217, %v216
    %v232 = vpack.c.b16 %v219, %v218
    %v233 = vpack.c.b16 %v221, %v220
    %v234 = vpack.c.b16 %v223, %v222
    %v235 = vpack.c.b16 %v225, %v224
    %v236 = vpack.c.b16 %v227, %v226
    %v237 = vpack.c.b16 %v229, %v228
    %246 = vmatprep.subr.bf16.mxu0 0
    %247 = vmatpush1.bf16.msra.mxu0 %v230
    %248 = vmatprep.subr.bf16.mxu0 0
    %249 = vmatpush1.bf16.msra.mxu0 %v231
    %250 = vmatprep.subr.bf16.mxu0 0
    %251 = vmatpush1.bf16.msra.mxu0 %v232
    %252 = vmatprep.subr.bf16.mxu0 0
    %253 = vmatpush1.bf16.msra.mxu0 %v233
    %254 = vmatprep.subr.bf16.mxu0 0
    %255 = vmatpush1.bf16.msra.mxu0 %v234
    %256 = vmatprep.subr.bf16.mxu0 0
    %257 = vmatpush1.bf16.msra.mxu0 %v235
    %258 = vmatprep.subr.bf16.mxu0 0
    %259 = vmatpush1.bf16.msra.mxu0 %v236
    %260 = vmatprep.subr.bf16.mxu0 0
    %261 = vmatpush1.bf16.msra.mxu0 %v237
    %262 = vmatprep.subr.bf16.mxu0 0
    %263 = vmatpush1.bf16.msra.mxu0 0
    %264 = vmatprep.subr.bf16.mxu0 0
    %265 = vmatpush1.bf16.msra.mxu0 0
    %266 = vmatprep.subr.bf16.mxu0 0
    %267 = vmatpush1.bf16.msra.mxu0 0
    %268 = vmatprep.subr.bf16.mxu0 0
    %269 = vmatpush1.bf16.msra.mxu0 0
    %270 = vmatprep.subr.bf16.mxu0 0
    %271 = vmatpush1.bf16.msra.mxu0 0
    %272 = vmatprep.subr.bf16.mxu0 0
    %273 = vmatpush1.bf16.msra.mxu0 0
    %274 = vmatprep.subr.bf16.mxu0 0
    %275 = vmatpush1.bf16.msra.mxu0 0
    %276 = vmatprep.subr.bf16.mxu0 0
    %277 = vmatpush1.bf16.msra.mxu0 0
    %278 = vmatprep.mubr.bf16.mxu0 0
    %279 = vmatmul.mubr.bf16.gmra.mrb[0].mxu0 %v181
    %v280 = vpop.f32.mrb[0].mxu0
    %v281 = vadd.f32 0.0, %v280
    %v282 = vpop.f32.mrb[0].mxu0
    %v283 = vpop.f32.mrb[0].mxu0
    %v284 = vpop.f32.mrb[0].mxu0
    %285 = vdwg.mxu0
    %v286 = vadd.f32 %v180, %v281
    %287 = vst [vmem:[#allocation2] sm:$0xff] %v286
    // Predicated region
    $region38: #{tpu_custom_call.1} parent=1 // pred_check
      %p288 = pneg %p61
    $region39: #{tpu_custom_call.1} parent=1 // pred_check_branch
      %290 = sbr.rel (%p288) target = $region41
    $region40: #{tpu_custom_call.1} parent=1 // pred_region
      %v291 = vld [vmem:[#allocation2] sm:$0xff]
      %v292 = vld [vmem:[%s4] sm:$0x1]
      %v294 = vlaneseq
      %v295 = vshrl.u32 %v294, 7
      %v296 = vsub.s32 0, %v295
      %v297 = vrot.slane %v292, %v296
      %v299 = vadd.f32 %v291, %v297
      %300 = vst [vmem:[#allocation9] sm:$0xff] %v299
    $region41: #{tpu_custom_call.1} parent=1 // pred_fallthru
      _
    // Predicated region
    $region42: #{tpu_custom_call.1} parent=1 // pred_check
      _
    $region43: #{tpu_custom_call.1} parent=1 // pred_check_branch
      %302 = sbr.rel (0) target = $region45
    $region44: #{tpu_custom_call.1} parent=1 // pred_region
      %s304 = ssub.s32 128, 128
      %305 = vsyncadd [#allocation5], %s304
      %s307 = sshll.u32 [#allocation9], 4
      %s308 = int_to_ptr.vmem [resolvable:$true] %s307
      %310 = dma.vmem_to_hbm [thread:$0]  %s308, 128, %s5, [#allocation5]
    $region45: #{tpu_custom_call.1} parent=1 // pred_fallthru
      _
    // Predicated region
    $region46: #{tpu_custom_call.1} parent=1 // pred_check
      _
    $region47: #{tpu_custom_call.1} parent=1 // pred_check_branch
      %312 = sbr.rel (0) target = $region49
    $region48: #{tpu_custom_call.1} parent=1 // pred_region
      %313 = dma.done [#allocation5], 128
    $region49: #{tpu_custom_call.1} parent=1 // pred_fallthru
      _
    %314 = vsyncpa [#allocation4], 1
    %315 = vsyncpa [#allocation7], 1
    %316 = vsyncpa [#allocation5], 1

// kernel: tpu_custom_call.1
$region0: #{tpu_custom_call.1}
  #allocation0 [shape = 'u32[]', space=smem, size = 0x4, offset = 0x4, fixed_abs, tag = 'smem constant byte address 0x4 - core index']
  #allocation1 [shape = 'u32[144,128]{1,0:T(1,128)}', space=vmem, size = 0x12000, scoped, tag = 'internal scratch']
  #allocation2 [shape = 'f32[8,128]{1,0:T(8,128)}', space=vmem, size = 0x1000, scoped, tag = 'scratch operand']
  %s0 = inlined_call_operand.hbm [shape: f32[8,128], index: 0, kind: input, shape index: {}]
  %s1 = inlined_call_operand.hbm [shape: bf16[128,128], index: 1, kind: input, shape index: {}]
  %s2 = inlined_call_operand.vmem [shape: f32[1,128], index: 2, kind: input, shape index: {}]
  %s3 = inlined_call_operand.hbm [shape: bf16[128,128], index: 3, kind: input, shape index: {}]
  %s4 = inlined_call_operand.vmem [shape: f32[1,128], index: 4, kind: input, shape index: {}]
  %s5 = inlined_call_operand.hbm [shape: f32[8,128], index: 5, kind: output, shape index: {}]
  %s6 = sld [smem:[#allocation0]]
  $region50: #{tpu_custom_call.1} parent=0
    _
  %s8 = ssub.s32 1, %s6
  %s9 = scalar_select 0, %s8, %s6
  $region1: #{tpu_custom_call.1} parent=0
    #allocation3 [shape = 'u8[4096]{0}', space=vmem, size = 0x1000, scoped, tag = 'input window, operand 0, single buffered']
    #allocation4 [shape = 's32[1]{0}', space=sflag, size = 0x4, scoped, tag = 'scoped memory for tpu_custom_call.1']
    #allocation5 [shape = 's32[1]{0}', space=sflag, size = 0x4, scoped, tag = 'scoped memory for tpu_custom_call.1']
    #allocation6 [shape = 'u8[32768]{0}', space=vmem, size = 0x8000, scoped, tag = 'input window, operand 1, single buffered']
    #allocation7 [shape = 's32[1]{0}', space=sflag, size = 0x4, scoped, tag = 'scoped memory for tpu_custom_call.1']
    #allocation8 [shape = 'u8[32768]{0}', space=vmem, size = 0x8000, scoped, tag = 'input window, operand 3, single buffered']
    #allocation9 [shape = 'u8[4096]{0}', space=vmem, size = 0x1000, scoped, tag = 'output window, operand 0, single buffered']
    %10 = vsyncpa [#allocation4], 0
    %11 = vsyncpa [#allocation7], 0
    %12 = vsyncpa [#allocation5], 0
    // Predicated region
    $region2: #{tpu_custom_call.1} parent=1 // pred_check
      _
    $region3: #{tpu_custom_call.1} parent=1 // pred_check_branch
      %14 = sbr.rel (0) target = $region5
    $region4: #{tpu_custom_call.1} parent=1 // pred_region
      %s16 = ssub.s32 128, 128
      %17 = vsyncadd [#allocation4], %s16
      %s19 = sshll.u32 [#allocation3], 4
      %s20 = int_to_ptr.vmem [resolvable:$true] %s19
      %22 = dma.hbm_to_vmem [thread:$0]  %s0, 128, %s20, [#allocation4]
    $region5: #{tpu_custom_call.1} parent=1 // pred_fallthru
      _
    // Predicated region
    $region6: #{tpu_custom_call.1} parent=1 // pred_check
      _
    $region7: #{tpu_custom_call.1} parent=1 // pred_check_branch
      %24 = sbr.rel (0) target = $region9
    $region8: #{tpu_custom_call.1} parent=1 // pred_region
      %s26 = ssub.s32 1024, 1024
      %27 = vsyncadd [#allocation7], %s26
      %s28 = sshll.u32 [#allocation6], 4
      %s29 = int_to_ptr.vmem [resolvable:$true] %s28
      %34 = dma.hbm_to_vmem [thread:$0]  %s1, 1024, %s29, [#allocation7], 64, 64, 4
    $region9: #{tpu_custom_call.1} parent=1 // pred_fallthru
      _
    // Predicated region
    $region10: #{tpu_custom_call.1} parent=1 // pred_check
      _
    $region11: #{tpu_custom_call.1} parent=1 // pred_check_branch
      %36 = sbr.rel (0) target = $region13
    $region12: #{tpu_custom_call.1} parent=1 // pred_region
      _
    $region13: #{tpu_custom_call.1} parent=1 // pred_fallthru
      _
    // Predicated region
    $region14: #{tpu_custom_call.1} parent=1 // pred_check
      _
    $region15: #{tpu_custom_call.1} parent=1 // pred_check_branch
      %38 = sbr.rel (0) target = $region17
    $region16: #{tpu_custom_call.1} parent=1 // pred_region
      %s40 = ssub.s32 1024, 1024
      %41 = vsyncadd [#allocation7], %s40
      %s42 = sshll.u32 [#allocation8], 4
      %s43 = int_to_ptr.vmem [resolvable:$true] %s42
      %48 = dma.hbm_to_vmem [thread:$0]  %s3, 1024, %s43, [#allocation7], 64, 64, 4
    $region17: #{tpu_custom_call.1} parent=1 // pred_fallthru
      _
    // Predicated region
    $region18: #{tpu_custom_call.1} parent=1 // pred_check
      _
    $region19: #{tpu_custom_call.1} parent=1 // pred_check_branch
      %50 = sbr.rel (0) target = $region21
    $region20: #{tpu_custom_call.1} parent=1 // pred_region
      _
    $region21: #{tpu_custom_call.1} parent=1 // pred_fallthru
      _
    // Predicated region
    $region22: #{tpu_custom_call.1} parent=1 // pred_check
      _
    $region23: #{tpu_custom_call.1} parent=1 // pred_check_branch
      %52 = sbr.rel (0) target = $region25
    $region24: #{tpu_custom_call.1} parent=1 // pred_region
      %53 = dma.done [#allocation4], 128
    $region25: #{tpu_custom_call.1} parent=1 // pred_fallthru
      _
    // Predicated region
    $region26: #{tpu_custom_call.1} parent=1 // pred_check
      _
    $region27: #{tpu_custom_call.1} parent=1 // pred_check_branch
      %55 = sbr.rel (0) target = $region29
    $region28: #{tpu_custom_call.1} parent=1 // pred_region
      %56 = dma.done [#allocation7], 1024
    $region29: #{tpu_custom_call.1} parent=1 // pred_fallthru
      _
    // Predicated region
    $region30: #{tpu_custom_call.1} parent=1 // pred_check
      _
    $region31: #{tpu_custom_call.1} parent=1 // pred_check_branch
      %58 = sbr.rel (0) target = $region33
    $region32: #{tpu_custom_call.1} parent=1 // pred_region
      %59 = dma.done [#allocation7], 1024
    $region33: #{tpu_custom_call.1} parent=1 // pred_fallthru
      _
    %p61 = scmp.eq.s32.totalorder 0, 0
    // Predicated region
    $region34: #{tpu_custom_call.1} parent=1 // pred_check
      %p62 = pneg %p61
    $region35: #{tpu_custom_call.1} parent=1 // pred_check_branch
      %64 = sbr.rel (%p62) target = $region37
    $region36: #{tpu_custom_call.1} parent=1 // pred_region
      %65 = vst [vmem:[#allocation2] sm:$0xff] 0.0
    $region37: #{tpu_custom_call.1} parent=1 // pred_fallthru
      _
    %v66 = vld [vmem:[#allocation3] sm:$0xff]
    %v67 = vpack.c.bf16 %v66, %v66
    %v68 = vld [vmem:[#allocation6] sm:$0xf]
    %v69 = vld [vmem:[#allocation6 + $0x4] sm:$0xf]
    %v70 = vld [vmem:[#allocation6 + $0x8] sm:$0xf]
    %v71 = vld [vmem:[#allocation6 + $0xc] sm:$0xf]
    %v72 = vld [vmem:[#allocation6 + $0x10] sm:$0xf]
    %v73 = vld [vmem:[#allocation6 + $0x14] sm:$0xf]
    %v74 = vld [vmem:[#allocation6 + $0x18] sm:$0xf]
    %v75 = vld [vmem:[#allocation6 + $0x1c] sm:$0xf]
    %v76 = vld [vmem:[#allocation6 + $0x20] sm:$0xf]
    %v77 = vld [vmem:[#allocation6 + $0x24] sm:$0xf]
    %v78 = vld [vmem:[#allocation6 + $0x28] sm:$0xf]
    %v79 = vld [vmem:[#allocation6 + $0x2c] sm:$0xf]
    %v80 = vld [vmem:[#allocation6 + $0x30] sm:$0xf]
    %v81 = vld [vmem:[#allocation6 + $0x34] sm:$0xf]
    %v82 = vld [vmem:[#allocation6 + $0x38] sm:$0xf]
    %v83 = vld [vmem:[#allocation6 + $0x3c] sm:$0xf]
    %v84 = vld [vmem:[%s2] sm:$0x1]
    %v86 = vlaneseq
    %v87 = vshrl.u32 %v86, 7
    %v88 = vsub.s32 0, %v87
    %v89 = vrot.slane %v84, %v88
    %v107 = vunpack.c.l.b16 %v68
    %v108 = vunpack.c.l.b16 %v69
    %v109 = vunpack.c.l.b16 %v70
    %v110 = vunpack.c.l.b16 %v71
    %v111 = vunpack.c.l.b16 %v72
    %v112 = vunpack.c.l.b16 %v73
    %v113 = vunpack.c.l.b16 %v74
    %v114 = vunpack.c.l.b16 %v75
    %v115 = vunpack.c.l.b16 %v76
    %v116 = vunpack.c.l.b16 %v77
    %v117 = vunpack.c.l.b16 %v78
    %v118 = vunpack.c.l.b16 %v79
    %v119 = vunpack.c.l.b16 %v80
    %v120 = vunpack.c.l.b16 %v81
    %v121 = vunpack.c.l.b16 %v82
    %v122 = vunpack.c.l.b16 %v83
    %v123 = vpack.c.b16 %v108, %v107
    %v124 = vpack.c.b16 %v110, %v109
    %v125 = vpack.c.b16 %v112, %v111
    %v126 = vpack.c.b16 %v114, %v113
    %v127 = vpack.c.b16 %v116, %v115
    %v128 = vpack.c.b16 %v118, %v117
    %v129 = vpack.c.b16 %v120, %v119
    %v130 = vpack.c.b16 %v122, %v121
    %139 = vmatprep.subr.bf16.mxu0 0
    %140 = vmatpush1.bf16.msra.mxu0 %v123
    %141 = vmatprep.subr.bf16.mxu0 0
    %142 = vmatpush1.bf16.msra.mxu0 %v124
    %143 = vmatprep.subr.bf16.mxu0 0
    %144 = vmatpush1.bf16.msra.mxu0 %v125
    %145 = vmatprep.subr.bf16.mxu0 0
    %146 = vmatpush1.bf16.msra.mxu0 %v126
    %147 = vmatprep.subr.bf16.mxu0 0
    %148 = vmatpush1.bf16.msra.mxu0 %v127
    %149 = vmatprep.subr.bf16.mxu0 0
    %150 = vmatpush1.bf16.msra.mxu0 %v128
    %151 = vmatprep.subr.bf16.mxu0 0
    %152 = vmatpush1.bf16.msra.mxu0 %v129
    %153 = vmatprep.subr.bf16.mxu0 0
    %154 = vmatpush1.bf16.msra.mxu0 %v130
    %155 = vmatprep.subr.bf16.mxu0 0
    %156 = vmatpush1.bf16.msra.mxu0 0
    %157 = vmatprep.subr.bf16.mxu0 0
    %158 = vmatpush1.bf16.msra.mxu0 0
    %159 = vmatprep.subr.bf16.mxu0 0
    %160 = vmatpush1.bf16.msra.mxu0 0
    %161 = vmatprep.subr.bf16.mxu0 0
    %162 = vmatpush1.bf16.msra.mxu0 0
    %163 = vmatprep.subr.bf16.mxu0 0
    %164 = vmatpush1.bf16.msra.mxu0 0
    %165 = vmatprep.subr.bf16.mxu0 0
    %166 = vmatpush1.bf16.msra.mxu0 0
    %167 = vmatprep.subr.bf16.mxu0 0
    %168 = vmatpush1.bf16.msra.mxu0 0
    %169 = vmatprep.subr.bf16.mxu0 0
    %170 = vmatpush1.bf16.msra.mxu0 0
    %171 = vmatprep.mubr.bf16.mxu0 0
    %172 = vmatmul.mubr.bf16.gmra.mrb[0].mxu0 %v67
    %v173 = vpop.f32.mrb[0].mxu0
    %v174 = vadd.f32 %v89, %v173
    %v175 = vpop.f32.mrb[0].mxu0
    %v176 = vpop.f32.mrb[0].mxu0
    %v177 = vpop.f32.mrb[0].mxu0
    %178 = vdwg.mxu0
    %v179 = vmax.f32 %v174, 0.0
    %v180 = vld [vmem:[#allocation2] sm:$0xff]
    %v181 = vpack.c.bf16 %v179, %v179
    %v182 = vld [vmem:[#allocation8] sm:$0xf]
    %v183 = vld [vmem:[#allocation8 + $0x4] sm:$0xf]
    %v184 = vld [vmem:[#allocation8 + $0x8] sm:$0xf]
    %v185 = vld [vmem:[#allocation8 + $0xc] sm:$0xf]
    %v186 = vld [vmem:[#allocation8 + $0x10] sm:$0xf]
    %v187 = vld [vmem:[#allocation8 + $0x14] sm:$0xf]
    %v188 = vld [vmem:[#allocation8 + $0x18] sm:$0xf]
    %v189 = vld [vmem:[#allocation8 + $0x1c] sm:$0xf]
    %v190 = vld [vmem:[#allocation8 + $0x20] sm:$0xf]
    %v191 = vld [vmem:[#allocation8 + $0x24] sm:$0xf]
    %v192 = vld [vmem:[#allocation8 + $0x28] sm:$0xf]
    %v193 = vld [vmem:[#allocation8 + $0x2c] sm:$0xf]
    %v194 = vld [vmem:[#allocation8 + $0x30] sm:$0xf]
    %v195 = vld [vmem:[#allocation8 + $0x34] sm:$0xf]
    %v196 = vld [vmem:[#allocation8 + $0x38] sm:$0xf]
    %v197 = vld [vmem:[#allocation8 + $0x3c] sm:$0xf]
    %v214 = vunpack.c.l.b16 %v182
    %v215 = vunpack.c.l.b16 %v183
    %v216 = vunpack.c.l.b16 %v184
    %v217 = vunpack.c.l.b16 %v185
    %v218 = vunpack.c.l.b16 %v186
    %v219 = vunpack.c.l.b16 %v187
    %v220 = vunpack.c.l.b16 %v188
    %v221 = vunpack.c.l.b16 %v189
    %v222 = vunpack.c.l.b16 %v190
    %v223 = vunpack.c.l.b16 %v191
    %v224 = vunpack.c.l.b16 %v192
    %v225 = vunpack.c.l.b16 %v193
    %v226 = vunpack.c.l.b16 %v194
    %v227 = vunpack.c.l.b16 %v195
    %v228 = vunpack.c.l.b16 %v196
    %v229 = vunpack.c.l.b16 %v197
    %v230 = vpack.c.b16 %v215, %v214
    %v231 = vpack.c.b16 %v217, %v216
    %v232 = vpack.c.b16 %v219, %v218
    %v233 = vpack.c.b16 %v221, %v220
    %v234 = vpack.c.b16 %v223, %v222
    %v235 = vpack.c.b16 %v225, %v224
    %v236 = vpack.c.b16 %v227, %v226
    %v237 = vpack.c.b16 %v229, %v228
    %246 = vmatprep.subr.bf16.mxu0 0
    %247 = vmatpush1.bf16.msra.mxu0 %v230
    %248 = vmatprep.subr.bf16.mxu0 0
    %249 = vmatpush1.bf16.msra.mxu0 %v231
    %250 = vmatprep.subr.bf16.mxu0 0
    %251 = vmatpush1.bf16.msra.mxu0 %v232
    %252 = vmatprep.subr.bf16.mxu0 0
    %253 = vmatpush1.bf16.msra.mxu0 %v233
    %254 = vmatprep.subr.bf16.mxu0 0
    %255 = vmatpush1.bf16.msra.mxu0 %v234
    %256 = vmatprep.subr.bf16.mxu0 0
    %257 = vmatpush1.bf16.msra.mxu0 %v235
    %258 = vmatprep.subr.bf16.mxu0 0
    %259 = vmatpush1.bf16.msra.mxu0 %v236
    %260 = vmatprep.subr.bf16.mxu0 0
    %261 = vmatpush1.bf16.msra.mxu0 %v237
    %262 = vmatprep.subr.bf16.mxu0 0
    %263 = vmatpush1.bf16.msra.mxu0 0
    %264 = vmatprep.subr.bf16.mxu0 0
    %265 = vmatpush1.bf16.msra.mxu0 0
    %266 = vmatprep.subr.bf16.mxu0 0
    %267 = vmatpush1.bf16.msra.mxu0 0
    %268 = vmatprep.subr.bf16.mxu0 0
    %269 = vmatpush1.bf16.msra.mxu0 0
    %270 = vmatprep.subr.bf16.mxu0 0
    %271 = vmatpush1.bf16.msra.mxu0 0
    %272 = vmatprep.subr.bf16.mxu0 0
    %273 = vmatpush1.bf16.msra.mxu0 0
    %274 = vmatprep.subr.bf16.mxu0 0
    %275 = vmatpush1.bf16.msra.mxu0 0
    %276 = vmatprep.subr.bf16.mxu0 0
    %277 = vmatpush1.bf16.msra.mxu0 0
    %278 = vmatprep.mubr.bf16.mxu0 0
    %279 = vmatmul.mubr.bf16.gmra.mrb[0].mxu0 %v181
    %v280 = vpop.f32.mrb[0].mxu0
    %v281 = vadd.f32 0.0, %v280
    %v282 = vpop.f32.mrb[0].mxu0
    %v283 = vpop.f32.mrb[0].mxu0
    %v284 = vpop.f32.mrb[0].mxu0
    %285 = vdwg.mxu0
    %v286 = vadd.f32 %v180, %v281
    %287 = vst [vmem:[#allocation2] sm:$0xff] %v286
    // Predicated region
    $region38: #{tpu_custom_call.1} parent=1 // pred_check
      %p288 = pneg %p61
    $region39: #{tpu_custom_call.1} parent=1 // pred_check_branch
      %290 = sbr.rel (%p288) target = $region41
    $region40: #{tpu_custom_call.1} parent=1 // pred_region
      %v291 = vld [vmem:[#allocation2] sm:$0xff]
      %v292 = vld [vmem:[%s4] sm:$0x1]
      %v294 = vlaneseq
      %v295 = vshrl.u32 %v294, 7
      %v296 = vsub.s32 0, %v295
      %v297 = vrot.slane %v292, %v296
      %v299 = vadd.f32 %v291, %v297
      %300 = vst [vmem:[#allocation9] sm:$0xff] %v299
    $region41: #{tpu_custom_call.1} parent=1 // pred_fallthru
      _
    // Predicated region
    $region42: #{tpu_custom_call.1} parent=1 // pred_check
      _
    $region43: #{tpu_custom_call.1} parent=1 // pred_check_branch
      %302 = sbr.rel (0) target = $region45
    $region44: #{tpu_custom_call.1} parent=1 // pred_region
      %s304 = ssub.s32 128, 128
      %305 = vsyncadd [#allocation5], %s304
      %s307 = sshll.u32 [#allocation9], 4
      %s308 = int_to_ptr.vmem [resolvable:$true] %s307
      %310 = dma.vmem_to_hbm [thread:$0]  %s308, 128, %s5, [#allocation5]
    $region45: #{tpu_custom_call.1} parent=1 // pred_fallthru
      _
    // Predicated region
    $region46: #{tpu_custom_call.1} parent=1 // pred_check
      _
    $region47: #{tpu_custom_call.1} parent=1 // pred_check_branch
      %312 = sbr.rel (0) target = $region49
    $region48: #{tpu_custom_call.1} parent=1 // pred_region
      %313 = dma.done [#allocation5], 128
    $region49: #{tpu_custom_call.1} parent=1 // pred_fallthru
      _
    %314 = vsyncpa [#allocation4], 1
    %315 = vsyncpa [#allocation7], 1
    %316 = vsyncpa [#allocation5], 1

</llo_original>
